<compile_context>
chip_gen: v7x
topology: tpu7x:2x2x1
jax: 0.10.0
libtpu: 0.0.40
codegen_flags: <defaults>
</compile_context>

<pallas_src>
import functools

import jax
import jax.numpy as jnp
from jax.experimental import pallas as pl
from jax.experimental.pallas import tpu as pltpu


def _snorm_kernel(x_ref, p_ref, out_ref, *, C, HW):
    """One grid step: TN whole samples, block = (TN, C*HW), lane-dense."""
    f32 = jnp.float32
    K = 4 * C                        # gamma-hidden (2C) ++ beta-hidden (2C)
    TN = x_ref.shape[0]
    inv_hw = 1.0 / HW
    inv_nm1 = 1.0 / max(HW - 1, 1)   # torch.Tensor.std() default: unbiased

    p = p_ref[...].astype(f32)       # (C, 4K + 2) packed MLP parameters
    b1 = p[0:1, K:2 * K]             # (1, K) fused first-layer bias

    # ---- pass 1: per-channel spatial stats + fused first Linear of both MLPs
    pre = jnp.broadcast_to(b1, (TN, K))
    stats = []
    for c in range(C):
        xc = x_ref[:, c * HW:(c + 1) * HW].astype(f32)          # (TN, HW)
        sx = jnp.sum(xc, axis=-1, keepdims=True)                # (TN, 1)
        mean = sx * inv_hw
        cen = xc - mean
        var = jnp.sum(cen * cen, axis=-1, keepdims=True) * inv_nm1
        inv = 1.0 / (jnp.sqrt(var) + 1e-5)                      # 1/(std+eps)
        # AdaptiveAvgPool2d((1,1)) of the normalized features, derived from
        # the sums already computed (no extra wide reduction):
        #   mean(norm) = (sum_x - HW*mean) * inv / HW   (~0 analytically)
        pooled = (sx - HW * mean) * (inv * inv_hw)               # (TN, 1)
        pre = pre + pooled * p[c:c + 1, 0:K]                     # += pooled_c * W1cat[:, c]
        stats.append((mean, inv))                                # tiny (TN,1) pairs
    h = jnp.maximum(pre, 0.0)                                    # (TN, K) shared hidden

    # ---- pass 2: second Linear of each MLP + affine write-back, per channel
    for c in range(C):
        mean, inv = stats[c]
        gamma = (jnp.sum(h * p[c:c + 1, 2 * K:3 * K], axis=-1, keepdims=True)
                 + p[c:c + 1, 4 * K:4 * K + 1])                  # (TN, 1)
        beta = (jnp.sum(h * p[c:c + 1, 3 * K:4 * K], axis=-1, keepdims=True)
                + p[c:c + 1, 4 * K + 1:4 * K + 2])               # (TN, 1)
        xc = x_ref[:, c * HW:(c + 1) * HW].astype(f32)
        # 1/(std+eps) folded into gamma: no `norm` temporary.
        out_ref[:, c * HW:(c + 1) * HW] = (
            (gamma * inv) * (xc - mean) + beta).astype(out_ref.dtype)


def _vmem_capacity_bytes():
    try:
        cap = int(pltpu.get_tpu_info().vmem_capacity_bytes)
        if cap > 0:
            return cap
    except Exception:
        pass
    return 64 << 20  # conservative: v7x per-TensorCore VMEM


def _choose_tiling(N, C, HW, itemsize):
    """Pick TN (samples per grid step) and the Mosaic VMEM limit."""
    vmem_cap = _vmem_capacity_bytes()
    vmem_limit = min((vmem_cap * 3) // 4, 64 << 20)          # 48 MiB on v7x, 64 on v5e/v6e
    block_budget = max(vmem_limit - (12 << 20), 2 << 20)     # headroom for consts/scratch
    row_bytes = C * HW * itemsize
    max_tn = block_budget // (4 * row_bytes)                 # in + out, double-buffered
    if max_tn < 1:
        # TODO(synk): HW-tiled two-pass (sum / sum-of-squares) variant.
        raise NotImplementedError(
            "SNorm Pallas kernel: one sample's C*H*W row (%d bytes) exceeds the "
            "VMEM block budget (%d bytes); an HW-tiled variant is required."
            % (row_bytes, block_budget))
    max_tn = min(int(max_tn), N)
    sub = max(1, 32 // itemsize)          # 8 (f32) / 16 (bf16) / 32 (int8) sublanes
    divisors = [d for d in range(1, max_tn + 1) if N % d == 0]
    aligned = [d for d in divisors if d % sub == 0]

    def pick(cands):
        # prefer >= 2 grid steps so ("parallel",) can use both v7x TensorCores
        multi = [d for d in cands if N // d >= 2]
        return multi[-1] if multi else cands[-1]

    if aligned:
        tn = pick(aligned)
    elif N <= max_tn:
        tn = N            # block sublane dim == full array dim -> always legal
    else:
        tn = pick(divisors)   # best effort (sublane-padded block)
    return tn, vmem_limit


def snorm_pallas(x, params, *, samples_per_step=None):
    """x: (N, C, H, W).  params: PyTorch-layout weights of the two MLPs."""
    gw1, gb1, gw2, gb2, bw1, bb1, bw2, bb2 = params
    N, C, H, W = x.shape
    HW = H * W
    tn, vmem_limit = _choose_tiling(N, C, HW, x.dtype.itemsize)
    if samples_per_step is not None:
        tn = samples_per_step
    assert N % tn == 0, "samples_per_step must divide N"

    f32 = jnp.float32
    K = 4 * C
    # One tiny packed constant: [ W1cat^T | b1cat (tiled) | gw2|0 | 0|bw2 | gb2 | bb2 ]
    w1t = jnp.concatenate([gw1, bw1], axis=0).T.astype(f32)                   # (C, K)
    b1t = jnp.tile(jnp.concatenate([gb1, bb1])[None, :], (C, 1)).astype(f32)  # (C, K)
    g2p = jnp.concatenate([gw2, jnp.zeros_like(gw2)], axis=1).astype(f32)     # (C, K)
    b2p = jnp.concatenate([jnp.zeros_like(bw2), bw2], axis=1).astype(f32)     # (C, K)
    consts = jnp.concatenate(
        [w1t, b1t, g2p, b2p,
         gb2[:, None].astype(f32), bb2[:, None].astype(f32)], axis=1)         # (C, 4K+2)

    x2 = x.reshape(N, C * HW)   # lane-dense rows; free reshape (contiguous)
    kernel = functools.partial(_snorm_kernel, C=C, HW=HW)
    out2 = pl.pallas_call(
        kernel,
        out_shape=jax.ShapeDtypeStruct((N, C * HW), x.dtype),
        grid=(N // tn,),
        in_specs=[
            pl.BlockSpec((tn, C * HW), lambda i: (i, 0)),
            pl.BlockSpec(consts.shape, lambda i: (0, 0)),
        ],
        out_specs=pl.BlockSpec((tn, C * HW), lambda i: (i, 0)),
        compiler_params=pltpu.CompilerParams(
            dimension_semantics=("parallel",),
            vmem_limit_bytes=int(vmem_limit),
        ),
        cost_estimate=pl.CostEstimate(
            flops=int(9 * N * C * HW),
            transcendentals=int(N * C),
            bytes_accessed=int(2 * N * C * HW * x.dtype.itemsize),
        ),
    )(x2, consts)
    return out2.reshape(N, C, H, W)


def snorm_ref(x, params):
    """Pure-JAX reference mirroring the PyTorch forward exactly."""
    gw1, gb1, gw2, gb2, bw1, bb1, bw2, bb2 = params
    N, C, H, W = x.shape
    xf = x.reshape(N, C, -1)
    mean = xf.mean(axis=2, keepdims=True)
    var = ((xf - mean) ** 2).sum(axis=2, keepdims=True) / (H * W - 1)  # unbiased
    std = jnp.sqrt(var)
    norm = (xf - mean) / (std + 1e-5)
    norm4 = norm.reshape(N, C, H, W)
    pooled = norm4.mean(axis=(2, 3))                        # (N, C)

    def mlp(pp, w1, b1, w2, b2):
        hh = jnp.maximum(pp @ w1.T + b1, 0.0)
        return hh @ w2.T + b2

    gamma = mlp(pooled, gw1, gb1, gw2, gb2)
    beta = mlp(pooled, bw1, bb1, bw2, bb2)
    return gamma[:, :, None, None] * norm4 + beta[:, :, None, None]


if __name__ == "__main__":
    N, C, H, W = 2, 4, 16, 16            # num_features == C == 4
    key = jax.random.PRNGKey(0)
    ks = jax.random.split(key, 9)
    x = jax.random.normal(ks[0], (N, C, H, W), jnp.float32)

    s = 0.5  # deterministic synthetic init (not a checkpoint)
    gw1 = jax.random.normal(ks[1], (2 * C, C), jnp.float32) * s   # gamma Linear(C, 2C).weight
    gb1 = jax.random.normal(ks[2], (2 * C,), jnp.float32) * s     # gamma Linear(C, 2C).bias
    gw2 = jax.random.normal(ks[3], (C, 2 * C), jnp.float32) * s   # gamma Linear(2C, C).weight
    gb2 = jax.random.normal(ks[4], (C,), jnp.float32) * s         # gamma Linear(2C, C).bias
    bw1 = jax.random.normal(ks[5], (2 * C, C), jnp.float32) * s   # beta  Linear(C, 2C).weight
    bb1 = jax.random.normal(ks[6], (2 * C,), jnp.float32) * s
    bw2 = jax.random.normal(ks[7], (C, 2 * C), jnp.float32) * s
    bb2 = jax.random.normal(ks[8], (C,), jnp.float32) * s
    params = (gw1, gb1, gw2, gb2, bw1, bb1, bw2, bb2)

    out = jax.block_until_ready(snorm_pallas(x, params))
    ref = snorm_ref(x, params)
    assert out.shape == (N, C, H, W)
    err = float(jnp.max(jnp.abs(out - ref)))
    assert jnp.allclose(out, ref, atol=1e-4, rtol=1e-4), f"max abs err {err}"
    print("KERNEL_OK")
</pallas_src>

<mosaic_0001>
module attributes {stable_mosaic.version = 11 : i64} {
  func.func @_snorm_kernel(%arg0: i32, %arg1: memref<2x1024xf32, #tpu.memory_space<vmem>>, %arg2: memref<4x66xf32, #tpu.memory_space<vmem>>, %arg3: memref<2x1024xf32, #tpu.memory_space<vmem>>) attributes {dimension_semantics = [#tpu.dimension_semantics<parallel>], iteration_bounds = array<i64: 1>, scalar_prefetch = 0 : i64, scratch_operands = 0 : i64, tpu.core_type = #tpu.core_type<tc>, window_params = [{transform_indices = @transform_0, window_bounds = array<i64: 2, 1024>}, {pipeline_mode = #tpu.pipeline_mode<synchronous>, transform_indices = @transform_1, window_bounds = array<i64: 4, 66>}, {transform_indices = @transform_2, window_bounds = array<i64: 2, 1024>}]} {
    %c0 = arith.constant 0 : index
    %c0_0 = arith.constant 0 : index
    %0 = vector.load %arg2[%c0, %c0_0] : memref<4x66xf32, #tpu.memory_space<vmem>>, vector<4x66xf32>
    %1 = vector.extract_strided_slice %0 {offsets = [0, 16], sizes = [1, 16], strides = [1, 1]} : vector<4x66xf32> to vector<1x16xf32>
    %2 = vector.shape_cast %1 : vector<1x16xf32> to vector<1x16xf32>
    %3 = vector.broadcast %2 : vector<1x16xf32> to vector<2x16xf32>
    %c0_1 = arith.constant 0 : index
    %c0_2 = arith.constant 0 : index
    %4 = vector.load %arg1[%c0_1, %c0_2] : memref<2x1024xf32, #tpu.memory_space<vmem>>, vector<2x256xf32>
    %cst = arith.constant dense<0.000000e+00> : vector<2xf32>
    %5 = vector.multi_reduction <add>, %4, %cst [1] : vector<2x256xf32> to vector<2xf32>
    %6 = vector.shape_cast %5 : vector<2xf32> to vector<2x1xf32>
    %cst_3 = arith.constant 3.906250e-03 : f32
    %7 = vector.broadcast %cst_3 : f32 to vector<2x1xf32>
    %8 = arith.mulf %6, %7 : vector<2x1xf32>
    %9 = vector.broadcast %8 : vector<2x1xf32> to vector<2x256xf32>
    %10 = arith.subf %4, %9 : vector<2x256xf32>
    %11 = arith.mulf %10, %10 : vector<2x256xf32>
    %cst_4 = arith.constant dense<0.000000e+00> : vector<2xf32>
    %12 = vector.multi_reduction <add>, %11, %cst_4 [1] : vector<2x256xf32> to vector<2xf32>
    %13 = vector.shape_cast %12 : vector<2xf32> to vector<2x1xf32>
    %cst_5 = arith.constant 0.00392156886 : f32
    %14 = vector.broadcast %cst_5 : f32 to vector<2x1xf32>
    %15 = arith.mulf %13, %14 : vector<2x1xf32>
    %16 = math.sqrt %15 : vector<2x1xf32>
    %cst_6 = arith.constant 9.99999974E-6 : f32
    %17 = vector.broadcast %cst_6 : f32 to vector<2x1xf32>
    %18 = arith.addf %16, %17 : vector<2x1xf32>
    %cst_7 = arith.constant 1.000000e+00 : f32
    %19 = vector.broadcast %cst_7 : f32 to vector<2x1xf32>
    %20 = arith.divf %19, %18 : vector<2x1xf32>
    %cst_8 = arith.constant 2.560000e+02 : f32
    %21 = vector.broadcast %cst_8 : f32 to vector<2x1xf32>
    %22 = arith.mulf %21, %8 : vector<2x1xf32>
    %23 = arith.subf %6, %22 : vector<2x1xf32>
    %cst_9 = arith.constant 3.906250e-03 : f32
    %24 = vector.broadcast %cst_9 : f32 to vector<2x1xf32>
    %25 = arith.mulf %20, %24 : vector<2x1xf32>
    %26 = arith.mulf %23, %25 : vector<2x1xf32>
    %27 = vector.extract_strided_slice %0 {offsets = [0, 0], sizes = [1, 16], strides = [1, 1]} : vector<4x66xf32> to vector<1x16xf32>
    %28 = vector.broadcast %26 : vector<2x1xf32> to vector<2x16xf32>
    %29 = vector.broadcast %27 : vector<1x16xf32> to vector<2x16xf32>
    %30 = arith.mulf %28, %29 : vector<2x16xf32>
    %31 = arith.addf %3, %30 : vector<2x16xf32>
    %c0_10 = arith.constant 0 : index
    %c256 = arith.constant 256 : index
    %32 = vector.load %arg1[%c0_10, %c256] : memref<2x1024xf32, #tpu.memory_space<vmem>>, vector<2x256xf32>
    %cst_11 = arith.constant dense<0.000000e+00> : vector<2xf32>
    %33 = vector.multi_reduction <add>, %32, %cst_11 [1] : vector<2x256xf32> to vector<2xf32>
    %34 = vector.shape_cast %33 : vector<2xf32> to vector<2x1xf32>
    %cst_12 = arith.constant 3.906250e-03 : f32
    %35 = vector.broadcast %cst_12 : f32 to vector<2x1xf32>
    %36 = arith.mulf %34, %35 : vector<2x1xf32>
    %37 = vector.broadcast %36 : vector<2x1xf32> to vector<2x256xf32>
    %38 = arith.subf %32, %37 : vector<2x256xf32>
    %39 = arith.mulf %38, %38 : vector<2x256xf32>
    %cst_13 = arith.constant dense<0.000000e+00> : vector<2xf32>
    %40 = vector.multi_reduction <add>, %39, %cst_13 [1] : vector<2x256xf32> to vector<2xf32>
    %41 = vector.shape_cast %40 : vector<2xf32> to vector<2x1xf32>
    %cst_14 = arith.constant 0.00392156886 : f32
    %42 = vector.broadcast %cst_14 : f32 to vector<2x1xf32>
    %43 = arith.mulf %41, %42 : vector<2x1xf32>
    %44 = math.sqrt %43 : vector<2x1xf32>
    %cst_15 = arith.constant 9.99999974E-6 : f32
    %45 = vector.broadcast %cst_15 : f32 to vector<2x1xf32>
    %46 = arith.addf %44, %45 : vector<2x1xf32>
    %cst_16 = arith.constant 1.000000e+00 : f32
    %47 = vector.broadcast %cst_16 : f32 to vector<2x1xf32>
    %48 = arith.divf %47, %46 : vector<2x1xf32>
    %cst_17 = arith.constant 2.560000e+02 : f32
    %49 = vector.broadcast %cst_17 : f32 to vector<2x1xf32>
    %50 = arith.mulf %49, %36 : vector<2x1xf32>
    %51 = arith.subf %34, %50 : vector<2x1xf32>
    %cst_18 = arith.constant 3.906250e-03 : f32
    %52 = vector.broadcast %cst_18 : f32 to vector<2x1xf32>
    %53 = arith.mulf %48, %52 : vector<2x1xf32>
    %54 = arith.mulf %51, %53 : vector<2x1xf32>
    %55 = vector.extract_strided_slice %0 {offsets = [1, 0], sizes = [1, 16], strides = [1, 1]} : vector<4x66xf32> to vector<1x16xf32>
    %56 = vector.broadcast %54 : vector<2x1xf32> to vector<2x16xf32>
    %57 = vector.broadcast %55 : vector<1x16xf32> to vector<2x16xf32>
    %58 = arith.mulf %56, %57 : vector<2x16xf32>
    %59 = arith.addf %31, %58 : vector<2x16xf32>
    %c0_19 = arith.constant 0 : index
    %c512 = arith.constant 512 : index
    %60 = vector.load %arg1[%c0_19, %c512] : memref<2x1024xf32, #tpu.memory_space<vmem>>, vector<2x256xf32>
    %cst_20 = arith.constant dense<0.000000e+00> : vector<2xf32>
    %61 = vector.multi_reduction <add>, %60, %cst_20 [1] : vector<2x256xf32> to vector<2xf32>
    %62 = vector.shape_cast %61 : vector<2xf32> to vector<2x1xf32>
    %cst_21 = arith.constant 3.906250e-03 : f32
    %63 = vector.broadcast %cst_21 : f32 to vector<2x1xf32>
    %64 = arith.mulf %62, %63 : vector<2x1xf32>
    %65 = vector.broadcast %64 : vector<2x1xf32> to vector<2x256xf32>
    %66 = arith.subf %60, %65 : vector<2x256xf32>
    %67 = arith.mulf %66, %66 : vector<2x256xf32>
    %cst_22 = arith.constant dense<0.000000e+00> : vector<2xf32>
    %68 = vector.multi_reduction <add>, %67, %cst_22 [1] : vector<2x256xf32> to vector<2xf32>
    %69 = vector.shape_cast %68 : vector<2xf32> to vector<2x1xf32>
    %cst_23 = arith.constant 0.00392156886 : f32
    %70 = vector.broadcast %cst_23 : f32 to vector<2x1xf32>
    %71 = arith.mulf %69, %70 : vector<2x1xf32>
    %72 = math.sqrt %71 : vector<2x1xf32>
    %cst_24 = arith.constant 9.99999974E-6 : f32
    %73 = vector.broadcast %cst_24 : f32 to vector<2x1xf32>
    %74 = arith.addf %72, %73 : vector<2x1xf32>
    %cst_25 = arith.constant 1.000000e+00 : f32
    %75 = vector.broadcast %cst_25 : f32 to vector<2x1xf32>
    %76 = arith.divf %75, %74 : vector<2x1xf32>
    %cst_26 = arith.constant 2.560000e+02 : f32
    %77 = vector.broadcast %cst_26 : f32 to vector<2x1xf32>
    %78 = arith.mulf %77, %64 : vector<2x1xf32>
    %79 = arith.subf %62, %78 : vector<2x1xf32>
    %cst_27 = arith.constant 3.906250e-03 : f32
    %80 = vector.broadcast %cst_27 : f32 to vector<2x1xf32>
    %81 = arith.mulf %76, %80 : vector<2x1xf32>
    %82 = arith.mulf %79, %81 : vector<2x1xf32>
    %83 = vector.extract_strided_slice %0 {offsets = [2, 0], sizes = [1, 16], strides = [1, 1]} : vector<4x66xf32> to vector<1x16xf32>
    %84 = vector.broadcast %82 : vector<2x1xf32> to vector<2x16xf32>
    %85 = vector.broadcast %83 : vector<1x16xf32> to vector<2x16xf32>
    %86 = arith.mulf %84, %85 : vector<2x16xf32>
    %87 = arith.addf %59, %86 : vector<2x16xf32>
    %c0_28 = arith.constant 0 : index
    %c768 = arith.constant 768 : index
    %88 = vector.load %arg1[%c0_28, %c768] : memref<2x1024xf32, #tpu.memory_space<vmem>>, vector<2x256xf32>
    %cst_29 = arith.constant dense<0.000000e+00> : vector<2xf32>
    %89 = vector.multi_reduction <add>, %88, %cst_29 [1] : vector<2x256xf32> to vector<2xf32>
    %90 = vector.shape_cast %89 : vector<2xf32> to vector<2x1xf32>
    %cst_30 = arith.constant 3.906250e-03 : f32
    %91 = vector.broadcast %cst_30 : f32 to vector<2x1xf32>
    %92 = arith.mulf %90, %91 : vector<2x1xf32>
    %93 = vector.broadcast %92 : vector<2x1xf32> to vector<2x256xf32>
    %94 = arith.subf %88, %93 : vector<2x256xf32>
    %95 = arith.mulf %94, %94 : vector<2x256xf32>
    %cst_31 = arith.constant dense<0.000000e+00> : vector<2xf32>
    %96 = vector.multi_reduction <add>, %95, %cst_31 [1] : vector<2x256xf32> to vector<2xf32>
    %97 = vector.shape_cast %96 : vector<2xf32> to vector<2x1xf32>
    %cst_32 = arith.constant 0.00392156886 : f32
    %98 = vector.broadcast %cst_32 : f32 to vector<2x1xf32>
    %99 = arith.mulf %97, %98 : vector<2x1xf32>
    %100 = math.sqrt %99 : vector<2x1xf32>
    %cst_33 = arith.constant 9.99999974E-6 : f32
    %101 = vector.broadcast %cst_33 : f32 to vector<2x1xf32>
    %102 = arith.addf %100, %101 : vector<2x1xf32>
    %cst_34 = arith.constant 1.000000e+00 : f32
    %103 = vector.broadcast %cst_34 : f32 to vector<2x1xf32>
    %104 = arith.divf %103, %102 : vector<2x1xf32>
    %cst_35 = arith.constant 2.560000e+02 : f32
    %105 = vector.broadcast %cst_35 : f32 to vector<2x1xf32>
    %106 = arith.mulf %105, %92 : vector<2x1xf32>
    %107 = arith.subf %90, %106 : vector<2x1xf32>
    %cst_36 = arith.constant 3.906250e-03 : f32
    %108 = vector.broadcast %cst_36 : f32 to vector<2x1xf32>
    %109 = arith.mulf %104, %108 : vector<2x1xf32>
    %110 = arith.mulf %107, %109 : vector<2x1xf32>
    %111 = vector.extract_strided_slice %0 {offsets = [3, 0], sizes = [1, 16], strides = [1, 1]} : vector<4x66xf32> to vector<1x16xf32>
    %112 = vector.broadcast %110 : vector<2x1xf32> to vector<2x16xf32>
    %113 = vector.broadcast %111 : vector<1x16xf32> to vector<2x16xf32>
    %114 = arith.mulf %112, %113 : vector<2x16xf32>
    %115 = arith.addf %87, %114 : vector<2x16xf32>
    %cst_37 = arith.constant 0.000000e+00 : f32
    %116 = vector.broadcast %cst_37 : f32 to vector<2x16xf32>
    %117 = arith.maximumf %115, %116 : vector<2x16xf32>
    %118 = vector.extract_strided_slice %0 {offsets = [0, 32], sizes = [1, 16], strides = [1, 1]} : vector<4x66xf32> to vector<1x16xf32>
    %119 = vector.broadcast %118 : vector<1x16xf32> to vector<2x16xf32>
    %120 = arith.mulf %117, %119 : vector<2x16xf32>
    %cst_38 = arith.constant dense<0.000000e+00> : vector<2xf32>
    %121 = vector.multi_reduction <add>, %120, %cst_38 [1] : vector<2x16xf32> to vector<2xf32>
    %122 = vector.shape_cast %121 : vector<2xf32> to vector<2x1xf32>
    %123 = vector.extract_strided_slice %0 {offsets = [0, 64], sizes = [1, 1], strides = [1, 1]} : vector<4x66xf32> to vector<1x1xf32>
    %124 = vector.broadcast %123 : vector<1x1xf32> to vector<2x1xf32>
    %125 = arith.addf %122, %124 : vector<2x1xf32>
    %126 = vector.extract_strided_slice %0 {offsets = [0, 48], sizes = [1, 16], strides = [1, 1]} : vector<4x66xf32> to vector<1x16xf32>
    %127 = vector.broadcast %126 : vector<1x16xf32> to vector<2x16xf32>
    %128 = arith.mulf %117, %127 : vector<2x16xf32>
    %cst_39 = arith.constant dense<0.000000e+00> : vector<2xf32>
    %129 = vector.multi_reduction <add>, %128, %cst_39 [1] : vector<2x16xf32> to vector<2xf32>
    %130 = vector.shape_cast %129 : vector<2xf32> to vector<2x1xf32>
    %131 = vector.extract_strided_slice %0 {offsets = [0, 65], sizes = [1, 1], strides = [1, 1]} : vector<4x66xf32> to vector<1x1xf32>
    %132 = vector.broadcast %131 : vector<1x1xf32> to vector<2x1xf32>
    %133 = arith.addf %130, %132 : vector<2x1xf32>
    %c0_40 = arith.constant 0 : index
    %c0_41 = arith.constant 0 : index
    %134 = vector.load %arg1[%c0_40, %c0_41] : memref<2x1024xf32, #tpu.memory_space<vmem>>, vector<2x256xf32>
    %135 = arith.mulf %125, %20 : vector<2x1xf32>
    %136 = vector.broadcast %8 : vector<2x1xf32> to vector<2x256xf32>
    %137 = arith.subf %134, %136 : vector<2x256xf32>
    %138 = vector.broadcast %135 : vector<2x1xf32> to vector<2x256xf32>
    %139 = arith.mulf %138, %137 : vector<2x256xf32>
    %140 = vector.broadcast %133 : vector<2x1xf32> to vector<2x256xf32>
    %141 = arith.addf %139, %140 : vector<2x256xf32>
    %c0_42 = arith.constant 0 : index
    %c0_43 = arith.constant 0 : index
    %142 = vector.load %arg3[%c0_42, %c0_43] : memref<2x1024xf32, #tpu.memory_space<vmem>>, vector<2x256xf32>
    tpu.vector_store %arg3[%c0_42, %c0_43], %141 {strides = array<i32>} : memref<2x1024xf32, #tpu.memory_space<vmem>>, vector<2x256xf32>,
    %143 = vector.extract_strided_slice %0 {offsets = [1, 32], sizes = [1, 16], strides = [1, 1]} : vector<4x66xf32> to vector<1x16xf32>
    %144 = vector.broadcast %143 : vector<1x16xf32> to vector<2x16xf32>
    %145 = arith.mulf %117, %144 : vector<2x16xf32>
    %cst_44 = arith.constant dense<0.000000e+00> : vector<2xf32>
    %146 = vector.multi_reduction <add>, %145, %cst_44 [1] : vector<2x16xf32> to vector<2xf32>
    %147 = vector.shape_cast %146 : vector<2xf32> to vector<2x1xf32>
    %148 = vector.extract_strided_slice %0 {offsets = [1, 64], sizes = [1, 1], strides = [1, 1]} : vector<4x66xf32> to vector<1x1xf32>
    %149 = vector.broadcast %148 : vector<1x1xf32> to vector<2x1xf32>
    %150 = arith.addf %147, %149 : vector<2x1xf32>
    %151 = vector.extract_strided_slice %0 {offsets = [1, 48], sizes = [1, 16], strides = [1, 1]} : vector<4x66xf32> to vector<1x16xf32>
    %152 = vector.broadcast %151 : vector<1x16xf32> to vector<2x16xf32>
    %153 = arith.mulf %117, %152 : vector<2x16xf32>
    %cst_45 = arith.constant dense<0.000000e+00> : vector<2xf32>
    %154 = vector.multi_reduction <add>, %153, %cst_45 [1] : vector<2x16xf32> to vector<2xf32>
    %155 = vector.shape_cast %154 : vector<2xf32> to vector<2x1xf32>
    %156 = vector.extract_strided_slice %0 {offsets = [1, 65], sizes = [1, 1], strides = [1, 1]} : vector<4x66xf32> to vector<1x1xf32>
    %157 = vector.broadcast %156 : vector<1x1xf32> to vector<2x1xf32>
    %158 = arith.addf %155, %157 : vector<2x1xf32>
    %c0_46 = arith.constant 0 : index
    %c256_47 = arith.constant 256 : index
    %159 = vector.load %arg1[%c0_46, %c256_47] : memref<2x1024xf32, #tpu.memory_space<vmem>>, vector<2x256xf32>
    %160 = arith.mulf %150, %48 : vector<2x1xf32>
    %161 = vector.broadcast %36 : vector<2x1xf32> to vector<2x256xf32>
    %162 = arith.subf %159, %161 : vector<2x256xf32>
    %163 = vector.broadcast %160 : vector<2x1xf32> to vector<2x256xf32>
    %164 = arith.mulf %163, %162 : vector<2x256xf32>
    %165 = vector.broadcast %158 : vector<2x1xf32> to vector<2x256xf32>
    %166 = arith.addf %164, %165 : vector<2x256xf32>
    %c0_48 = arith.constant 0 : index
    %c256_49 = arith.constant 256 : index
    %167 = vector.load %arg3[%c0_48, %c256_49] : memref<2x1024xf32, #tpu.memory_space<vmem>>, vector<2x256xf32>
    tpu.vector_store %arg3[%c0_48, %c256_49], %166 {strides = array<i32>} : memref<2x1024xf32, #tpu.memory_space<vmem>>, vector<2x256xf32>,
    %168 = vector.extract_strided_slice %0 {offsets = [2, 32], sizes = [1, 16], strides = [1, 1]} : vector<4x66xf32> to vector<1x16xf32>
    %169 = vector.broadcast %168 : vector<1x16xf32> to vector<2x16xf32>
    %170 = arith.mulf %117, %169 : vector<2x16xf32>
    %cst_50 = arith.constant dense<0.000000e+00> : vector<2xf32>
    %171 = vector.multi_reduction <add>, %170, %cst_50 [1] : vector<2x16xf32> to vector<2xf32>
    %172 = vector.shape_cast %171 : vector<2xf32> to vector<2x1xf32>
    %173 = vector.extract_strided_slice %0 {offsets = [2, 64], sizes = [1, 1], strides = [1, 1]} : vector<4x66xf32> to vector<1x1xf32>
    %174 = vector.broadcast %173 : vector<1x1xf32> to vector<2x1xf32>
    %175 = arith.addf %172, %174 : vector<2x1xf32>
    %176 = vector.extract_strided_slice %0 {offsets = [2, 48], sizes = [1, 16], strides = [1, 1]} : vector<4x66xf32> to vector<1x16xf32>
    %177 = vector.broadcast %176 : vector<1x16xf32> to vector<2x16xf32>
    %178 = arith.mulf %117, %177 : vector<2x16xf32>
    %cst_51 = arith.constant dense<0.000000e+00> : vector<2xf32>
    %179 = vector.multi_reduction <add>, %178, %cst_51 [1] : vector<2x16xf32> to vector<2xf32>
    %180 = vector.shape_cast %179 : vector<2xf32> to vector<2x1xf32>
    %181 = vector.extract_strided_slice %0 {offsets = [2, 65], sizes = [1, 1], strides = [1, 1]} : vector<4x66xf32> to vector<1x1xf32>
    %182 = vector.broadcast %181 : vector<1x1xf32> to vector<2x1xf32>
    %183 = arith.addf %180, %182 : vector<2x1xf32>
    %c0_52 = arith.constant 0 : index
    %c512_53 = arith.constant 512 : index
    %184 = vector.load %arg1[%c0_52, %c512_53] : memref<2x1024xf32, #tpu.memory_space<vmem>>, vector<2x256xf32>
    %185 = arith.mulf %175, %76 : vector<2x1xf32>
    %186 = vector.broadcast %64 : vector<2x1xf32> to vector<2x256xf32>
    %187 = arith.subf %184, %186 : vector<2x256xf32>
    %188 = vector.broadcast %185 : vector<2x1xf32> to vector<2x256xf32>
    %189 = arith.mulf %188, %187 : vector<2x256xf32>
    %190 = vector.broadcast %183 : vector<2x1xf32> to vector<2x256xf32>
    %191 = arith.addf %189, %190 : vector<2x256xf32>
    %c0_54 = arith.constant 0 : index
    %c512_55 = arith.constant 512 : index
    %192 = vector.load %arg3[%c0_54, %c512_55] : memref<2x1024xf32, #tpu.memory_space<vmem>>, vector<2x256xf32>
    tpu.vector_store %arg3[%c0_54, %c512_55], %191 {strides = array<i32>} : memref<2x1024xf32, #tpu.memory_space<vmem>>, vector<2x256xf32>,
    %193 = vector.extract_strided_slice %0 {offsets = [3, 32], sizes = [1, 16], strides = [1, 1]} : vector<4x66xf32> to vector<1x16xf32>
    %194 = vector.broadcast %193 : vector<1x16xf32> to vector<2x16xf32>
    %195 = arith.mulf %117, %194 : vector<2x16xf32>
    %cst_56 = arith.constant dense<0.000000e+00> : vector<2xf32>
    %196 = vector.multi_reduction <add>, %195, %cst_56 [1] : vector<2x16xf32> to vector<2xf32>
    %197 = vector.shape_cast %196 : vector<2xf32> to vector<2x1xf32>
    %198 = vector.extract_strided_slice %0 {offsets = [3, 64], sizes = [1, 1], strides = [1, 1]} : vector<4x66xf32> to vector<1x1xf32>
    %199 = vector.broadcast %198 : vector<1x1xf32> to vector<2x1xf32>
    %200 = arith.addf %197, %199 : vector<2x1xf32>
    %201 = vector.extract_strided_slice %0 {offsets = [3, 48], sizes = [1, 16], strides = [1, 1]} : vector<4x66xf32> to vector<1x16xf32>
    %202 = vector.broadcast %201 : vector<1x16xf32> to vector<2x16xf32>
    %203 = arith.mulf %117, %202 : vector<2x16xf32>
    %cst_57 = arith.constant dense<0.000000e+00> : vector<2xf32>
    %204 = vector.multi_reduction <add>, %203, %cst_57 [1] : vector<2x16xf32> to vector<2xf32>
    %205 = vector.shape_cast %204 : vector<2xf32> to vector<2x1xf32>
    %206 = vector.extract_strided_slice %0 {offsets = [3, 65], sizes = [1, 1], strides = [1, 1]} : vector<4x66xf32> to vector<1x1xf32>
    %207 = vector.broadcast %206 : vector<1x1xf32> to vector<2x1xf32>
    %208 = arith.addf %205, %207 : vector<2x1xf32>
    %c0_58 = arith.constant 0 : index
    %c768_59 = arith.constant 768 : index
    %209 = vector.load %arg1[%c0_58, %c768_59] : memref<2x1024xf32, #tpu.memory_space<vmem>>, vector<2x256xf32>
    %210 = arith.mulf %200, %104 : vector<2x1xf32>
    %211 = vector.broadcast %92 : vector<2x1xf32> to vector<2x256xf32>
    %212 = arith.subf %209, %211 : vector<2x256xf32>
    %213 = vector.broadcast %210 : vector<2x1xf32> to vector<2x256xf32>
    %214 = arith.mulf %213, %212 : vector<2x256xf32>
    %215 = vector.broadcast %208 : vector<2x1xf32> to vector<2x256xf32>
    %216 = arith.addf %214, %215 : vector<2x256xf32>
    %c0_60 = arith.constant 0 : index
    %c768_61 = arith.constant 768 : index
    %217 = vector.load %arg3[%c0_60, %c768_61] : memref<2x1024xf32, #tpu.memory_space<vmem>>, vector<2x256xf32>
    tpu.vector_store %arg3[%c0_60, %c768_61], %216 {strides = array<i32>} : memref<2x1024xf32, #tpu.memory_space<vmem>>, vector<2x256xf32>,
    return
  }
  func.func @transform_0(%arg0: i32) -> (i32, i32) {
    %c0_i32 = arith.constant 0 : i32
    %c0_i32_0 = arith.constant 0 : i32
    return %arg0, %c0_i32 : i32, i32
  }
  func.func @transform_1(%arg0: i32) -> (i32, i32) {
    %c0_i32 = arith.constant 0 : i32
    %c0_i32_0 = arith.constant 0 : i32
    %c0_i32_1 = arith.constant 0 : i32
    return %c0_i32, %c0_i32_0 : i32, i32
  }
  func.func @transform_2(%arg0: i32) -> (i32, i32) {
    %c0_i32 = arith.constant 0 : i32
    %c0_i32_0 = arith.constant 0 : i32
    return %arg0, %c0_i32 : i32, i32
  }
}

</mosaic_0001>

<llo_original>
// kernel: tpu_custom_call.1
$region0: #{tpu_custom_call.1}
  #allocation0 [shape = 'u32[]', space=smem, size = 0x4, offset = 0x4, fixed_abs, tag = 'smem constant byte address 0x4 - core index']
  #allocation1 [shape = 'u32[144,128]{1,0:T(1,128)}', space=vmem, size = 0x12000, scoped, tag = 'internal scratch']
  %s0 = inlined_call_operand.hbm [shape: f32[2,1024], index: 0, kind: input, shape index: {}]
  %s1 = inlined_call_operand.hbm [shape: f32[4,66], index: 1, kind: input, shape index: {}]
  %s2 = inlined_call_operand.hbm [shape: f32[2,1024], index: 2, kind: output, shape index: {}]
  %s3 = sld [smem:[#allocation0]]
  $region26: #{tpu_custom_call.1} parent=0
    _
  %s5 = ssub.s32 1, %s3
  %s6 = scalar_select 0, %s5, %s3
  $region1: #{tpu_custom_call.1} parent=0
    #allocation2 [shape = 'u8[8192]{0}', space=vmem, size = 0x2000, scoped, tag = 'input window, operand 0, single buffered']
    #allocation3 [shape = 's32[1]{0}', space=sflag, size = 0x4, scoped, tag = 'scoped memory for tpu_custom_call.1']
    #allocation4 [shape = 's32[1]{0}', space=sflag, size = 0x4, scoped, tag = 'scoped memory for tpu_custom_call.1']
    #allocation5 [shape = 'u8[2048]{0}', space=vmem, size = 0x800, scoped, tag = 'input window, operand 1, single buffered']
    #allocation6 [shape = 's32[1]{0}', space=sflag, size = 0x4, scoped, tag = 'scoped memory for tpu_custom_call.1']
    #allocation7 [shape = 'u8[8192]{0}', space=vmem, size = 0x2000, scoped, tag = 'output window, operand 0, single buffered']
    %7 = vsyncpa [#allocation3], 0
    %8 = vsyncpa [#allocation6], 0
    %9 = vsyncpa [#allocation4], 0
    // Predicated region
    $region2: #{tpu_custom_call.1} parent=1 // pred_check
      _
    $region3: #{tpu_custom_call.1} parent=1 // pred_check_branch
      %11 = sbr.rel (0) target = $region5
    $region4: #{tpu_custom_call.1} parent=1 // pred_region
      %s13 = ssub.s32 256, 256
      %14 = vsyncadd [#allocation3], %s13
      %s16 = sshll.u32 [#allocation2], 4
      %s17 = int_to_ptr.vmem [resolvable:$true] %s16
      %19 = dma.hbm_to_vmem [thread:$0]  %s0, 256, %s17, [#allocation3]
    $region5: #{tpu_custom_call.1} parent=1 // pred_fallthru
      _
    // Predicated region
    $region6: #{tpu_custom_call.1} parent=1 // pred_check
      _
    $region7: #{tpu_custom_call.1} parent=1 // pred_check_branch
      %21 = sbr.rel (0) target = $region9
    $region8: #{tpu_custom_call.1} parent=1 // pred_region
      %s23 = ssub.s32 64, 64
      %24 = vsyncadd [#allocation6], %s23
      %s26 = sshll.u32 [#allocation5], 4
      %s27 = int_to_ptr.vmem [resolvable:$true] %s26
      %29 = dma.hbm_to_vmem [thread:$0]  %s1, 64, %s27, [#allocation6]
    $region9: #{tpu_custom_call.1} parent=1 // pred_fallthru
      _
    // Predicated region
    $region10: #{tpu_custom_call.1} parent=1 // pred_check
      _
    $region11: #{tpu_custom_call.1} parent=1 // pred_check_branch
      %31 = sbr.rel (0) target = $region13
    $region12: #{tpu_custom_call.1} parent=1 // pred_region
      %32 = dma.done [#allocation3], 256
    $region13: #{tpu_custom_call.1} parent=1 // pred_fallthru
      _
    // Predicated region
    $region14: #{tpu_custom_call.1} parent=1 // pred_check
      _
    $region15: #{tpu_custom_call.1} parent=1 // pred_check_branch
      %34 = sbr.rel (0) target = $region17
    $region16: #{tpu_custom_call.1} parent=1 // pred_region
      %35 = dma.done [#allocation6], 64
    $region17: #{tpu_custom_call.1} parent=1 // pred_fallthru
      _
    %v36 = vld [vmem:[#allocation5] sm:$0xf]
    %v37 = vlaneseq
    %v38 = vshrl.u32 %v37, 7
    %v39 = vsub.s32 0, %v38
    %v40 = vrot.slane %v36, %v39
    %v41 = vld [vmem:[#allocation2] sm:$0xf]
    %v44 = vunpack.c.l.s4 1983009808
    %v45 = vunpack.c.0.s8 %v44
    %v46 = vlaneseq
    %v47 = vshrl.u32 %v46, 7
    %v48 = vsub.s32 %v45, %v47
    %v49 = vrot.slane %v41, %v48
    %v50 = vcombine.high %v49, %v49
    %vm53 = vcmask 1041408
    %v54 = vsel %vm53, %v49, 0.0
    %v55 = vsel %vm53, %v50, 0.0
    %v56 = vadd.f32 %v54, %v55
    %57 = vadd.xlane.f32.xlu0 %v56
    %v58 = vpop.xlane.xlu0 %57
    %v59 = vmul.f32 %v58, 0.00390625
    %v62 = vunpack.c.l.s4 269488144
    %v63 = vunpack.c.0.s8 %v62
    %v64 = vlaneseq
    %v65 = vshrl.u32 %v64, 7
    %v66 = vsub.s32 %v63, %v65
    %v67 = vrot.slane %v59, %v66
    %v69 = vsub.f32 %v41, %v67
    %v70 = vmul.f32 %v69, %v69
    %v73 = vunpack.c.l.s4 1983009808
    %v74 = vunpack.c.0.s8 %v73
    %v75 = vlaneseq
    %v76 = vshrl.u32 %v75, 7
    %v77 = vsub.s32 %v74, %v76
    %v78 = vrot.slane %v70, %v77
    %v79 = vcombine.high %v78, %v78
    %v82 = vsel %vm53, %v78, 0.0
    %v83 = vsel %vm53, %v79, 0.0
    %v84 = vadd.f32 %v82, %v83
    %85 = vadd.xlane.f32.xlu0 %v84
    %v86 = vpop.xlane.xlu0 %85
    %v87 = vmul.f32 %v86, 0.003921569
    %v88 = vrsqrt.pop %v87
    %v89 = vmul.f32 %v87, %v88
    %vm90 = vcmp.eq.f32.partialorder %v87, inf
    %v91 = vsel %vm90, %v87, %v89
    %vm92 = vcmp.eq.f32.partialorder %v87, 0.0
    %v93 = vand.u32 %v87, 2147483648
    %v94 = vsel %vm92, %v93, %v91
    %v95 = vadd.f32 %v94, 1e-05
    %v96 = vrcp.pop %v95
    %v97 = vmul.f32 1.0, %v96
    %v98 = vmul.f32 %v59, 256.0
    %v99 = vsub.f32 %v58, %v98
    %v100 = vmul.f32 %v97, 0.00390625
    %v101 = vmul.f32 %v99, %v100
    %v102 = vmul.f32 %v101, %v40
    %104 = vrot.lane.b32.xlu0 %v102, 16
    %v105 = vpop.permute.xlu0 %104
    %v107 = vadd.f32 %v40, %v105
    %v108 = vld [vmem:[#allocation2 + $0x4] sm:$0xf]
    %v111 = vunpack.c.l.s4 1983009808
    %v112 = vunpack.c.0.s8 %v111
    %v113 = vlaneseq
    %v114 = vshrl.u32 %v113, 7
    %v115 = vsub.s32 %v112, %v114
    %v116 = vrot.slane %v108, %v115
    %v117 = vcombine.high %v116, %v116
    %v120 = vsel %vm53, %v116, 0.0
    %v121 = vsel %vm53, %v117, 0.0
    %v122 = vadd.f32 %v120, %v121
    %123 = vadd.xlane.f32.xlu0 %v122
    %v124 = vpop.xlane.xlu0 %123
    %v125 = vmul.f32 %v124, 0.00390625
    %v128 = vunpack.c.l.s4 269488144
    %v129 = vunpack.c.0.s8 %v128
    %v130 = vlaneseq
    %v131 = vshrl.u32 %v130, 7
    %v132 = vsub.s32 %v129, %v131
    %v133 = vrot.slane %v125, %v132
    %v135 = vsub.f32 %v108, %v133
    %v136 = vmul.f32 %v135, %v135
    %v139 = vunpack.c.l.s4 1983009808
    %v140 = vunpack.c.0.s8 %v139
    %v141 = vlaneseq
    %v142 = vshrl.u32 %v141, 7
    %v143 = vsub.s32 %v140, %v142
    %v144 = vrot.slane %v136, %v143
    %v145 = vcombine.high %v144, %v144
    %v148 = vsel %vm53, %v144, 0.0
    %v149 = vsel %vm53, %v145, 0.0
    %v150 = vadd.f32 %v148, %v149
    %151 = vadd.xlane.f32.xlu0 %v150
    %v152 = vpop.xlane.xlu0 %151
    %v153 = vmul.f32 %v152, 0.003921569
    %v154 = vrsqrt.pop %v153
    %v155 = vmul.f32 %v153, %v154
    %vm156 = vcmp.eq.f32.partialorder %v153, inf
    %v157 = vsel %vm156, %v153, %v155
    %vm158 = vcmp.eq.f32.partialorder %v153, 0.0
    %v159 = vand.u32 %v153, 2147483648
    %v160 = vsel %vm158, %v159, %v157
    %v161 = vadd.f32 %v160, 1e-05
    %v162 = vrcp.pop %v161
    %v163 = vmul.f32 1.0, %v162
    %v164 = vmul.f32 %v125, 256.0
    %v165 = vsub.f32 %v124, %v164
    %v166 = vmul.f32 %v163, 0.00390625
    %v167 = vmul.f32 %v165, %v166
    %v168 = vlaneseq
    %v169 = vshrl.u32 %v168, 7
    %v170 = vsub.s32 1, %v169
    %v171 = vrot.slane %v36, %v170
    %v172 = vmul.f32 %v167, %v171
    %174 = vrot.lane.b32.xlu0 %v172, 16
    %v175 = vpop.permute.xlu0 %174
    %v177 = vadd.f32 %v107, %v175
    %v178 = vld [vmem:[#allocation2 + $0x8] sm:$0xf]
    %v181 = vunpack.c.l.s4 1983009808
    %v182 = vunpack.c.0.s8 %v181
    %v183 = vlaneseq
    %v184 = vshrl.u32 %v183, 7
    %v185 = vsub.s32 %v182, %v184
    %v186 = vrot.slane %v178, %v185
    %v187 = vcombine.high %v186, %v186
    %v190 = vsel %vm53, %v186, 0.0
    %v191 = vsel %vm53, %v187, 0.0
    %v192 = vadd.f32 %v190, %v191
    %193 = vadd.xlane.f32.xlu0 %v192
    %v194 = vpop.xlane.xlu0 %193
    %v195 = vmul.f32 %v194, 0.00390625
    %v198 = vunpack.c.l.s4 269488144
    %v199 = vunpack.c.0.s8 %v198
    %v200 = vlaneseq
    %v201 = vshrl.u32 %v200, 7
    %v202 = vsub.s32 %v199, %v201
    %v203 = vrot.slane %v195, %v202
    %v205 = vsub.f32 %v178, %v203
    %v206 = vmul.f32 %v205, %v205
    %v209 = vunpack.c.l.s4 1983009808
    %v210 = vunpack.c.0.s8 %v209
    %v211 = vlaneseq
    %v212 = vshrl.u32 %v211, 7
    %v213 = vsub.s32 %v210, %v212
    %v214 = vrot.slane %v206, %v213
    %v215 = vcombine.high %v214, %v214
    %v218 = vsel %vm53, %v214, 0.0
    %v219 = vsel %vm53, %v215, 0.0
    %v220 = vadd.f32 %v218, %v219
    %221 = vadd.xlane.f32.xlu0 %v220
    %v222 = vpop.xlane.xlu0 %221
    %v223 = vmul.f32 %v222, 0.003921569
    %v224 = vrsqrt.pop %v223
    %v225 = vmul.f32 %v223, %v224
    %vm226 = vcmp.eq.f32.partialorder %v223, inf
    %v227 = vsel %vm226, %v223, %v225
    %vm228 = vcmp.eq.f32.partialorder %v223, 0.0
    %v229 = vand.u32 %v223, 2147483648
    %v230 = vsel %vm228, %v229, %v227
    %v231 = vadd.f32 %v230, 1e-05
    %v232 = vrcp.pop %v231
    %v233 = vmul.f32 1.0, %v232
    %v234 = vmul.f32 %v195, 256.0
    %v235 = vsub.f32 %v194, %v234
    %v236 = vmul.f32 %v233, 0.00390625
    %v237 = vmul.f32 %v235, %v236
    %v238 = vlaneseq
    %v239 = vshrl.u32 %v238, 7
    %v240 = vsub.s32 2, %v239
    %v241 = vrot.slane %v36, %v240
    %v242 = vmul.f32 %v237, %v241
    %244 = vrot.lane.b32.xlu0 %v242, 16
    %v245 = vpop.permute.xlu0 %244
    %v247 = vadd.f32 %v177, %v245
    %v248 = vld [vmem:[#allocation2 + $0xc] sm:$0xf]
    %v251 = vunpack.c.l.s4 1983009808
    %v252 = vunpack.c.0.s8 %v251
    %v253 = vlaneseq
    %v254 = vshrl.u32 %v253, 7
    %v255 = vsub.s32 %v252, %v254
    %v256 = vrot.slane %v248, %v255
    %v257 = vcombine.high %v256, %v256
    %v260 = vsel %vm53, %v256, 0.0
    %v261 = vsel %vm53, %v257, 0.0
    %v262 = vadd.f32 %v260, %v261
    %263 = vadd.xlane.f32.xlu0 %v262
    %v264 = vpop.xlane.xlu0 %263
    %v265 = vmul.f32 %v264, 0.00390625
    %v268 = vunpack.c.l.s4 269488144
    %v269 = vunpack.c.0.s8 %v268
    %v270 = vlaneseq
    %v271 = vshrl.u32 %v270, 7
    %v272 = vsub.s32 %v269, %v271
    %v273 = vrot.slane %v265, %v272
    %v275 = vsub.f32 %v248, %v273
    %v276 = vmul.f32 %v275, %v275
    %v279 = vunpack.c.l.s4 1983009808
    %v280 = vunpack.c.0.s8 %v279
    %v281 = vlaneseq
    %v282 = vshrl.u32 %v281, 7
    %v283 = vsub.s32 %v280, %v282
    %v284 = vrot.slane %v276, %v283
    %v285 = vcombine.high %v284, %v284
    %v288 = vsel %vm53, %v284, 0.0
    %v289 = vsel %vm53, %v285, 0.0
    %v290 = vadd.f32 %v288, %v289
    %291 = vadd.xlane.f32.xlu0 %v290
    %v292 = vpop.xlane.xlu0 %291
    %v293 = vmul.f32 %v292, 0.003921569
    %v294 = vrsqrt.pop %v293
    %v295 = vmul.f32 %v293, %v294
    %vm296 = vcmp.eq.f32.partialorder %v293, inf
    %v297 = vsel %vm296, %v293, %v295
    %vm298 = vcmp.eq.f32.partialorder %v293, 0.0
    %v299 = vand.u32 %v293, 2147483648
    %v300 = vsel %vm298, %v299, %v297
    %v301 = vadd.f32 %v300, 1e-05
    %v302 = vrcp.pop %v301
    %v303 = vmul.f32 1.0, %v302
    %v304 = vmul.f32 %v265, 256.0
    %v305 = vsub.f32 %v264, %v304
    %v306 = vmul.f32 %v303, 0.00390625
    %v307 = vmul.f32 %v305, %v306
    %v308 = vlaneseq
    %v309 = vshrl.u32 %v308, 7
    %v310 = vsub.s32 3, %v309
    %v311 = vrot.slane %v36, %v310
    %v312 = vmul.f32 %v307, %v311
    %314 = vrot.lane.b32.xlu0 %v312, 16
    %v315 = vpop.permute.xlu0 %314
    %v317 = vadd.f32 %v247, %v315
    %v318 = vmax.f32 %v317, 0.0
    %320 = vrot.lane.b32.xlu0 %v40, 112
    %v321 = vpop.permute.xlu0 %320
    %v323 = vmul.f32 %v318, %v321
    %325 = vrot.lane.b32.xlu0 %v323, 112
    %v326 = vpop.permute.xlu0 %325
    %vm328 = vcmask 123904
    %v329 = vsel %vm328, %v326, 0.0
    %330 = vadd.xlane.f32.xlu0 %v329
    %v331 = vpop.xlane.xlu0 %330
    %v332 = vadd.f32 %v331, %v40
    %333 = vrot.lane.b32.xlu0 %v40, 96
    %v334 = vpop.permute.xlu0 %333
    %v336 = vmul.f32 %v318, %v334
    %338 = vrot.lane.b32.xlu0 %v336, 112
    %v339 = vpop.permute.xlu0 %338
    %v341 = vsel %vm328, %v339, 0.0
    %342 = vadd.xlane.f32.xlu0 %v341
    %v343 = vpop.xlane.xlu0 %342
    %v344 = vadd.f32 %v343, %v40
    %v345 = vmul.f32 %v332, %v97
    %347 = vset.pattern.permute.xlu0 64
    %348 = vperm.xlu0 %347, %v345
    %v349 = vpop.permute.xlu0 %348
    %v353 = vunpack.c.l.s4 1983009808
    %v354 = vunpack.c.0.s8 %v353
    %v355 = vlaneseq
    %v356 = vshrl.u32 %v355, 7
    %v357 = vsub.s32 %v354, %v356
    %v358 = vrot.slane %v69, %v357
    %v359 = vcombine.high %v358, %v358
    %v362 = vmul.f32 %v349, %v358
    %v363 = vmul.f32 %v349, %v359
    %365 = vset.pattern.permute.xlu0 65
    %366 = vperm.xlu0 %365, %v344
    %v367 = vpop.permute.xlu0 %366
    %v369 = vadd.f32 %v362, %v367
    %v370 = vadd.f32 %v363, %v367
    %v373 = vcombine.low %v369, %v370
    %v375 = vunpack.c.l.s4 1983009808
    %v376 = vunpack.c.0.s8 %v375
    %v377 = vlaneseq
    %v378 = vshrl.u32 %v377, 7
    %v379 = vsub.s32 %v376, %v378
    %v380 = vrot.slane %v373, %v379
    %382 = vst [vmem:[#allocation7] sm:$0xf] %v380
    %384 = vrot.lane.b32.xlu0 %v171, 112
    %v385 = vpop.permute.xlu0 %384
    %v387 = vmul.f32 %v318, %v385
    %389 = vrot.lane.b32.xlu0 %v387, 112
    %v390 = vpop.permute.xlu0 %389
    %v392 = vsel %vm328, %v390, 0.0
    %393 = vadd.xlane.f32.xlu0 %v392
    %v394 = vpop.xlane.xlu0 %393
    %v395 = vadd.f32 %v394, %v171
    %396 = vrot.lane.b32.xlu0 %v171, 96
    %v397 = vpop.permute.xlu0 %396
    %v399 = vmul.f32 %v318, %v397
    %401 = vrot.lane.b32.xlu0 %v399, 112
    %v402 = vpop.permute.xlu0 %401
    %v404 = vsel %vm328, %v402, 0.0
    %405 = vadd.xlane.f32.xlu0 %v404
    %v406 = vpop.xlane.xlu0 %405
    %v407 = vadd.f32 %v406, %v171
    %v408 = vld [vmem:[#allocation2 + $0x4] sm:$0xf]
    %v409 = vmul.f32 %v395, %v163
    %v410 = vsub.f32 %v408, %v133
    %412 = vset.pattern.permute.xlu0 64
    %413 = vperm.xlu0 %412, %v409
    %v414 = vpop.permute.xlu0 %413
    %v418 = vunpack.c.l.s4 1983009808
    %v419 = vunpack.c.0.s8 %v418
    %v420 = vlaneseq
    %v421 = vshrl.u32 %v420, 7
    %v422 = vsub.s32 %v419, %v421
    %v423 = vrot.slane %v410, %v422
    %v424 = vcombine.high %v423, %v423
    %v427 = vmul.f32 %v414, %v423
    %v428 = vmul.f32 %v414, %v424
    %430 = vset.pattern.permute.xlu0 65
    %431 = vperm.xlu0 %430, %v407
    %v432 = vpop.permute.xlu0 %431
    %v434 = vadd.f32 %v427, %v432
    %v435 = vadd.f32 %v428, %v432
    %v438 = vcombine.low %v434, %v435
    %v440 = vunpack.c.l.s4 1983009808
    %v441 = vunpack.c.0.s8 %v440
    %v442 = vlaneseq
    %v443 = vshrl.u32 %v442, 7
    %v444 = vsub.s32 %v441, %v443
    %v445 = vrot.slane %v438, %v444
    %447 = vst [vmem:[#allocation7 + $0x4] sm:$0xf] %v445
    %449 = vrot.lane.b32.xlu0 %v241, 112
    %v450 = vpop.permute.xlu0 %449
    %v452 = vmul.f32 %v318, %v450
    %454 = vrot.lane.b32.xlu0 %v452, 112
    %v455 = vpop.permute.xlu0 %454
    %v457 = vsel %vm328, %v455, 0.0
    %458 = vadd.xlane.f32.xlu0 %v457
    %v459 = vpop.xlane.xlu0 %458
    %v460 = vadd.f32 %v459, %v241
    %461 = vrot.lane.b32.xlu0 %v241, 96
    %v462 = vpop.permute.xlu0 %461
    %v464 = vmul.f32 %v318, %v462
    %466 = vrot.lane.b32.xlu0 %v464, 112
    %v467 = vpop.permute.xlu0 %466
    %v469 = vsel %vm328, %v467, 0.0
    %470 = vadd.xlane.f32.xlu0 %v469
    %v471 = vpop.xlane.xlu0 %470
    %v472 = vadd.f32 %v471, %v241
    %v473 = vld [vmem:[#allocation2 + $0x8] sm:$0xf]
    %v474 = vmul.f32 %v460, %v233
    %v475 = vsub.f32 %v473, %v203
    %477 = vset.pattern.permute.xlu0 64
    %478 = vperm.xlu0 %477, %v474
    %v479 = vpop.permute.xlu0 %478
    %v483 = vunpack.c.l.s4 1983009808
    %v484 = vunpack.c.0.s8 %v483
    %v485 = vlaneseq
    %v486 = vshrl.u32 %v485, 7
    %v487 = vsub.s32 %v484, %v486
    %v488 = vrot.slane %v475, %v487
    %v489 = vcombine.high %v488, %v488
    %v492 = vmul.f32 %v479, %v488
    %v493 = vmul.f32 %v479, %v489
    %495 = vset.pattern.permute.xlu0 65
    %496 = vperm.xlu0 %495, %v472
    %v497 = vpop.permute.xlu0 %496
    %v499 = vadd.f32 %v492, %v497
    %v500 = vadd.f32 %v493, %v497
    %v503 = vcombine.low %v499, %v500
    %v505 = vunpack.c.l.s4 1983009808
    %v506 = vunpack.c.0.s8 %v505
    %v507 = vlaneseq
    %v508 = vshrl.u32 %v507, 7
    %v509 = vsub.s32 %v506, %v508
    %v510 = vrot.slane %v503, %v509
    %512 = vst [vmem:[#allocation7 + $0x8] sm:$0xf] %v510
    %514 = vrot.lane.b32.xlu0 %v311, 112
    %v515 = vpop.permute.xlu0 %514
    %v517 = vmul.f32 %v318, %v515
    %519 = vrot.lane.b32.xlu0 %v517, 112
    %v520 = vpop.permute.xlu0 %519
    %v522 = vsel %vm328, %v520, 0.0
    %523 = vadd.xlane.f32.xlu0 %v522
    %v524 = vpop.xlane.xlu0 %523
    %v525 = vadd.f32 %v524, %v311
    %526 = vrot.lane.b32.xlu0 %v311, 96
    %v527 = vpop.permute.xlu0 %526
    %v529 = vmul.f32 %v318, %v527
    %531 = vrot.lane.b32.xlu0 %v529, 112
    %v532 = vpop.permute.xlu0 %531
    %v534 = vsel %vm328, %v532, 0.0
    %535 = vadd.xlane.f32.xlu0 %v534
    %v536 = vpop.xlane.xlu0 %535
    %v537 = vadd.f32 %v536, %v311
    %v538 = vld [vmem:[#allocation2 + $0xc] sm:$0xf]
    %v539 = vmul.f32 %v525, %v303
    %v540 = vsub.f32 %v538, %v273
    %542 = vset.pattern.permute.xlu0 64
    %543 = vperm.xlu0 %542, %v539
    %v544 = vpop.permute.xlu0 %543
    %v548 = vunpack.c.l.s4 1983009808
    %v549 = vunpack.c.0.s8 %v548
    %v550 = vlaneseq
    %v551 = vshrl.u32 %v550, 7
    %v552 = vsub.s32 %v549, %v551
    %v553 = vrot.slane %v540, %v552
    %v554 = vcombine.high %v553, %v553
    %v557 = vmul.f32 %v544, %v553
    %v558 = vmul.f32 %v544, %v554
    %560 = vset.pattern.permute.xlu0 65
    %561 = vperm.xlu0 %560, %v537
    %v562 = vpop.permute.xlu0 %561
    %v564 = vadd.f32 %v557, %v562
    %v565 = vadd.f32 %v558, %v562
    %v568 = vcombine.low %v564, %v565
    %v570 = vunpack.c.l.s4 1983009808
    %v571 = vunpack.c.0.s8 %v570
    %v572 = vlaneseq
    %v573 = vshrl.u32 %v572, 7
    %v574 = vsub.s32 %v571, %v573
    %v575 = vrot.slane %v568, %v574
    %577 = vst [vmem:[#allocation7 + $0xc] sm:$0xf] %v575
    // Predicated region
    $region18: #{tpu_custom_call.1} parent=1 // pred_check
      _
    $region19: #{tpu_custom_call.1} parent=1 // pred_check_branch
      %579 = sbr.rel (0) target = $region21
    $region20: #{tpu_custom_call.1} parent=1 // pred_region
      %s581 = ssub.s32 256, 256
      %582 = vsyncadd [#allocation4], %s581
      %s584 = sshll.u32 [#allocation7], 4
      %s585 = int_to_ptr.vmem [resolvable:$true] %s584
      %587 = dma.vmem_to_hbm [thread:$0]  %s585, 256, %s2, [#allocation4]
    $region21: #{tpu_custom_call.1} parent=1 // pred_fallthru
      _
    // Predicated region
    $region22: #{tpu_custom_call.1} parent=1 // pred_check
      _
    $region23: #{tpu_custom_call.1} parent=1 // pred_check_branch
      %589 = sbr.rel (0) target = $region25
    $region24: #{tpu_custom_call.1} parent=1 // pred_region
      %590 = dma.done [#allocation4], 256
    $region25: #{tpu_custom_call.1} parent=1 // pred_fallthru
      _
    %591 = vsyncpa [#allocation3], 1
    %592 = vsyncpa [#allocation6], 1
    %593 = vsyncpa [#allocation4], 1

</llo_original>
